<compile_context>
chip_gen: v5e
topology: v5e:2x2
jax: 0.10.0
libtpu: 0.0.40
codegen_flags: <defaults>
</compile_context>

<pallas_src>
import functools

import jax
import jax.numpy as jnp
from jax.experimental import pallas as pl
from jax.experimental.pallas import tpu as pltpu

BN_EPS = 1e-5
LANE = 128


def _round_up(n, m=LANE):
    return ((n + m - 1) // m) * m


def _full_spec(shape):
    return pl.BlockSpec(shape, lambda: tuple(0 for _ in shape))


# ---------------------------------------------------------------------------
# Fused Pallas kernel: all residual blocks + both heads in one body
# ---------------------------------------------------------------------------
def _fused_encoder_kernel(*refs, layer_flags, latent_pad, latent_dim):
    """refs = (x0, w0, scales, [w_mid], w_head, b_head, mean_out, std_out)

    x0      : (B, in0_pad)  f32   zero-padded concat([xc, xp])
    w0      : (in0_pad, H_pad) bf16
    scales  : (L, 3, H_pad) f32   rows = [gamma, beta, bias]
    w_mid   : (L-1, H_pad, H_pad) bf16   (absent when L == 1)
    w_head  : (H_pad, 2*latent_pad) bf16  fused [W_mean | W_std]
    b_head  : (1, 2*latent_pad) f32
    layer_flags: static tuple of (add_residual, use_bn) per block.
    """
    n_layers = len(layer_flags)
    has_mid = n_layers > 1

    x0_ref, w0_ref, scales_ref = refs[0], refs[1], refs[2]
    pos = 3
    w_mid_ref = None
    if has_mid:
        w_mid_ref = refs[pos]
        pos += 1
    w_head_ref, b_head_ref = refs[pos], refs[pos + 1]
    mean_ref, std_ref = refs[pos + 2], refs[pos + 3]

    x = x0_ref[...]                                   # f32 activations

    for li in range(n_layers):
        add_res, use_bn = layer_flags[li]
        w = w0_ref[...] if li == 0 else w_mid_ref[li - 1]
        # bf16 x bf16 -> f32 accumulate on the MXU.
        h = jnp.dot(x.astype(jnp.bfloat16), w,
                    preferred_element_type=jnp.float32)
        sc = scales_ref[li]                           # (3, H_pad) f32
        if use_bn:
            # Linear bias dropped: BN(h + b) == BN(h) in training mode.
            mean = jnp.mean(h, axis=0, keepdims=True)
            var = jnp.mean((h - mean) * (h - mean), axis=0, keepdims=True)
            h = (h - mean) * jax.lax.rsqrt(var + BN_EPS) * sc[0:1, :] + sc[1:2, :]
        else:
            h = h + sc[2:3, :]                        # bias only when no BN
        h = jnp.maximum(h, 0.0)
        if add_res:
            h = h + x
        x = h

    # Fused heads: one dot onto [W_mean | W_std]; exp on the std half (EUP).
    hh = jnp.dot(x.astype(jnp.bfloat16), w_head_ref[...],
                 preferred_element_type=jnp.float32) + b_head_ref[...]
    mean_ref[...] = hh[:, :latent_pad]
    std_half = hh[:, latent_pad:]
    if latent_pad != latent_dim:
        # Keep padded std lanes exactly 0 (not exp(0)=1) in the lane-dense output.
        lane = jax.lax.broadcasted_iota(jnp.int32, (1, latent_pad), 1)
        std_ref[...] = jnp.where(lane < latent_dim, jnp.exp(std_half), 0.0)
    else:
        std_ref[...] = jnp.exp(std_half)


# ---------------------------------------------------------------------------
# Parameter setup (real shapes, PyTorch-style init; weights stored (in, out))
# ---------------------------------------------------------------------------
def init_params(key, clinical_dim, proteomics_dim, latent_dim, hidden_dims):
    params = {"blocks": [], "clinical_dim": clinical_dim,
              "proteomics_dim": proteomics_dim, "latent_dim": latent_dim}
    in_dim = clinical_dim + proteomics_dim
    for h_dim in hidden_dims:
        key, kw, kb = jax.random.split(key, 3)
        bound = 1.0 / jnp.sqrt(in_dim)
        w = jax.random.uniform(kw, (in_dim, h_dim), jnp.float32, -bound, bound)
        b = jax.random.uniform(kb, (1, h_dim), jnp.float32, -bound, bound)
        params["blocks"].append(
            dict(w=w, b=b,
                 gamma=jnp.ones((1, h_dim), jnp.float32),
                 beta=jnp.zeros((1, h_dim), jnp.float32),
                 add_residual=(in_dim == h_dim), use_bn=(h_dim > 1)))
        in_dim = h_dim
    key, kwm, kbm, kws, kbs = jax.random.split(key, 5)
    bound = 1.0 / jnp.sqrt(in_dim)
    params["wm"] = jax.random.uniform(kwm, (in_dim, latent_dim), jnp.float32, -bound, bound)
    params["bm"] = jax.random.uniform(kbm, (1, latent_dim), jnp.float32, -bound, bound)
    params["ws"] = jax.random.uniform(kws, (in_dim, latent_dim), jnp.float32, -bound, bound)
    params["bs"] = jax.random.uniform(kbs, (1, latent_dim), jnp.float32, -bound, bound)
    return params


def prepare_padded_params(params):
    """One-time host-side prep: pad every feature dim to a 128-lane multiple,
    stack per-layer params into a few arrays, fuse the two head weights,
    and cast all matmul weights to bf16."""
    cd, pd_ = params["clinical_dim"], params["proteomics_dim"]
    latent = params["latent_dim"]
    blocks = params["blocks"]
    concat_dim = cd + pd_

    layer_flags = tuple((blk["add_residual"], blk["use_bn"]) for blk in blocks)
    # Uniform padded hidden width -> all mid-layer weights stack cleanly and
    # padded lanes stay exactly 0 through BN/ReLU/residual.
    h_pad = max(_round_up(blk["w"].shape[1]) for blk in blocks)

    in0_pad = _round_up(concat_dim)
    if layer_flags[0][0]:            # block-0 residual: x0 must match h width
        in0_pad = max(in0_pad, h_pad)

    # Block-0 weight (concat fold done via zero-padded x0).
    w0 = blocks[0]["w"]              # (concat_dim, h0)
    w0p = jnp.pad(w0, ((0, in0_pad - concat_dim), (0, h_pad - w0.shape[1])))
    w0p = w0p.astype(jnp.bfloat16)

    # Stacked mid-layer weights.
    mids = []
    for blk in blocks[1:]:
        w = blk["w"]
        mids.append(jnp.pad(w, ((0, h_pad - w.shape[0]), (0, h_pad - w.shape[1]))))
    w_mid = jnp.stack(mids).astype(jnp.bfloat16) if mids else None

    # Stacked per-layer [gamma, beta, bias]; bias is only consumed when
    # use_bn is False (BN cancels the linear bias exactly in training mode).
    scs = []
    for blk in blocks:
        h_real = blk["w"].shape[1]
        g = jnp.concatenate([blk["gamma"][0], jnp.ones((h_pad - h_real,), jnp.float32)])
        be = jnp.concatenate([blk["beta"][0], jnp.zeros((h_pad - h_real,), jnp.float32)])
        bi = jnp.concatenate([blk["b"][0], jnp.zeros((h_pad - h_real,), jnp.float32)])
        scs.append(jnp.stack([g, be, bi]))
    scales = jnp.stack(scs)          # (L, 3, h_pad) f32

    # Fused heads.
    latent_pad = _round_up(latent)
    h_last = blocks[-1]["w"].shape[1]
    wm = jnp.pad(params["wm"], ((0, h_pad - h_last), (0, latent_pad - latent)))
    ws = jnp.pad(params["ws"], ((0, h_pad - h_last), (0, latent_pad - latent)))
    bm = jnp.pad(params["bm"], ((0, 0), (0, latent_pad - latent)))
    bs = jnp.pad(params["bs"], ((0, 0), (0, latent_pad - latent)))

    return dict(
        w0=w0p, scales=scales, w_mid=w_mid,
        w_head=jnp.concatenate([wm, ws], axis=1).astype(jnp.bfloat16),
        b_head=jnp.concatenate([bm, bs], axis=1),
        in0_pad=in0_pad, h_pad=h_pad,
        latent_pad=latent_pad, latent_dim=latent,
        concat_dim=concat_dim, layer_flags=layer_flags)


# ---------------------------------------------------------------------------
# Forward: one fused pallas_call
# ---------------------------------------------------------------------------
def flexible_encoder_forward(padded, xc, xp):
    B = xc.shape[0]
    latent_pad = padded["latent_pad"]
    latent = padded["latent_dim"]
    in0_pad = padded["in0_pad"]
    h_pad = padded["h_pad"]
    n_layers = len(padded["layer_flags"])

    # Host-side concat + zero-pad to a full 128-lane contraction dim (one
    # K=in0_pad dot inside the kernel instead of two sub-128 split dots).
    x0 = jnp.concatenate([xc, xp], axis=-1)
    x0 = jnp.pad(x0, ((0, 0), (0, in0_pad - padded["concat_dim"])))

    inputs = [x0, padded["w0"], padded["scales"]]
    if padded["w_mid"] is not None:
        inputs.append(padded["w_mid"])
    inputs += [padded["w_head"], padded["b_head"]]

    kernel = functools.partial(
        _fused_encoder_kernel, layer_flags=padded["layer_flags"],
        latent_pad=latent_pad, latent_dim=latent)

    # Actual VMEM footprint (inputs + outputs + small headroom), not a
    # blanket 32 MiB, so surrounding XLA fusions keep their scoped VMEM.
    out_bytes = 2 * B * latent_pad * 4
    in_bytes = sum(a.size * a.dtype.itemsize for a in inputs)
    vmem_limit = max(4 << 20, 2 * (in_bytes + out_bytes))

    flops = 2 * B * (in0_pad * h_pad
                     + (n_layers - 1) * h_pad * h_pad
                     + h_pad * 2 * latent_pad)
    cost = pl.CostEstimate(flops=flops,
                           transcendentals=B * latent_pad + n_layers * h_pad,
                           bytes_accessed=in_bytes + out_bytes)

    mean_p, std_p = pl.pallas_call(
        kernel,
        out_shape=(jax.ShapeDtypeStruct((B, latent_pad), jnp.float32),
                   jax.ShapeDtypeStruct((B, latent_pad), jnp.float32)),
        in_specs=[_full_spec(a.shape) for a in inputs],
        out_specs=(_full_spec((B, latent_pad)), _full_spec((B, latent_pad))),
        compiler_params=pltpu.CompilerParams(vmem_limit_bytes=int(vmem_limit)),
        cost_estimate=cost,
    )(*inputs)

    return mean_p[:, :latent], std_p[:, :latent]


# Pure-JAX reference (real, unpadded f32 params) for correctness check.
def flexible_encoder_ref(params, xc, xp):
    x = jnp.concatenate([xc, xp], axis=-1)
    for blk in params["blocks"]:
        h = x @ blk["w"] + blk["b"]
        if blk["use_bn"]:
            mean = jnp.mean(h, axis=0, keepdims=True)
            var = jnp.mean((h - mean) ** 2, axis=0, keepdims=True)
            h = (h - mean) / jnp.sqrt(var + BN_EPS) * blk["gamma"] + blk["beta"]
        h = jnp.maximum(h, 0.0)
        if blk["add_residual"]:
            h = h + x
        x = h
    z_mean = x @ params["wm"] + params["bm"]
    z_std = jnp.exp(x @ params["ws"] + params["bs"])
    return z_mean, z_std


if __name__ == "__main__":
    B = 8
    clinical_dim, proteomics_dim = 4, 12     # concatenated input dim = 16
    hidden_dims = [32, 32]                   # second block exercises residual add
    latent_dim = 8

    key = jax.random.PRNGKey(0)
    kp, kc, kpx = jax.random.split(key, 3)
    params = init_params(kp, clinical_dim, proteomics_dim, latent_dim, hidden_dims)
    padded = prepare_padded_params(params)   # one-time padding / stacking / bf16 cast
    xc = jax.random.normal(kc, (B, clinical_dim), jnp.float32)
    xp = jax.random.normal(kpx, (B, proteomics_dim), jnp.float32)

    z_mean, z_std = flexible_encoder_forward(padded, xc, xp)
    jax.block_until_ready((z_mean, z_std))

    zm_ref, zs_ref = flexible_encoder_ref(params, xc, xp)
    # bf16 weights (f32 accumulate) -> relaxed tolerance vs. the f32 reference.
    assert jnp.allclose(z_mean, zm_ref, atol=2e-2, rtol=2e-2)
    assert jnp.allclose(z_std, zs_ref, atol=2e-2, rtol=2e-2)

    print("KERNEL_OK")
</pallas_src>

<mosaic_0001>
module attributes {stable_mosaic.version = 11 : i64} {
  func.func @_fused_encoder_kernel(%arg0: memref<8x128xf32, #tpu.memory_space<vmem>>, %arg1: memref<128x128xbf16, #tpu.memory_space<vmem>>, %arg2: memref<2x3x128xf32, #tpu.memory_space<vmem>>, %arg3: memref<1x128x128xbf16, #tpu.memory_space<vmem>>, %arg4: memref<128x256xbf16, #tpu.memory_space<vmem>>, %arg5: memref<1x256xf32, #tpu.memory_space<vmem>>, %arg6: memref<8x128xf32, #tpu.memory_space<vmem>>, %arg7: memref<8x128xf32, #tpu.memory_space<vmem>>) attributes {dimension_semantics = [], scalar_prefetch = 0 : i64, scratch_operands = 0 : i64, tpu.core_type = #tpu.core_type<tc>} {
    %c0 = arith.constant 0 : index
    %c0_0 = arith.constant 0 : index
    %0 = vector.load %arg0[%c0, %c0_0] : memref<8x128xf32, #tpu.memory_space<vmem>>, vector<8x128xf32>
    %c0_1 = arith.constant 0 : index
    %c0_2 = arith.constant 0 : index
    %1 = vector.load %arg1[%c0_1, %c0_2] : memref<128x128xbf16, #tpu.memory_space<vmem>>, vector<128x128xbf16>
    %2 = arith.truncf %0 : vector<8x128xf32> to vector<8x128xbf16>
    %cst = arith.constant dense<0.000000e+00> : vector<8x128xf32>
    %3 = tpu.matmul %2, %1, %cst {dimension_numbers = #tpu.dot_dimension_numbers<[1], [0], [0], [1], [0, 0, 1, 1], [], []>} : vector<8x128xbf16>, vector<128x128xbf16>, vector<8x128xf32> -> vector<8x128xf32>
    %c0_3 = arith.constant 0 : index
    %c0_4 = arith.constant 0 : index
    %c0_5 = arith.constant 0 : index
    %4 = vector.load %arg2[%c0_3, %c0_4, %c0_5] : memref<2x3x128xf32, #tpu.memory_space<vmem>>, vector<1x3x128xf32>
    %5 = vector.shape_cast %4 : vector<1x3x128xf32> to vector<3x128xf32>
    %cst_6 = arith.constant dense<0.000000e+00> : vector<128xf32>
    %6 = vector.multi_reduction <add>, %3, %cst_6 [0] : vector<8x128xf32> to vector<128xf32>
    %7 = vector.shape_cast %6 : vector<128xf32> to vector<1x128xf32>
    %cst_7 = arith.constant 8.000000e+00 : f32
    %8 = vector.broadcast %cst_7 : f32 to vector<1x128xf32>
    %9 = arith.divf %7, %8 : vector<1x128xf32>
    %10 = vector.broadcast %9 : vector<1x128xf32> to vector<8x128xf32>
    %11 = arith.subf %3, %10 : vector<8x128xf32>
    %12 = vector.broadcast %9 : vector<1x128xf32> to vector<8x128xf32>
    %13 = arith.subf %3, %12 : vector<8x128xf32>
    %14 = arith.mulf %11, %13 : vector<8x128xf32>
    %cst_8 = arith.constant dense<0.000000e+00> : vector<128xf32>
    %15 = vector.multi_reduction <add>, %14, %cst_8 [0] : vector<8x128xf32> to vector<128xf32>
    %16 = vector.shape_cast %15 : vector<128xf32> to vector<1x128xf32>
    %cst_9 = arith.constant 8.000000e+00 : f32
    %17 = vector.broadcast %cst_9 : f32 to vector<1x128xf32>
    %18 = arith.divf %16, %17 : vector<1x128xf32>
    %19 = vector.broadcast %9 : vector<1x128xf32> to vector<8x128xf32>
    %20 = arith.subf %3, %19 : vector<8x128xf32>
    %cst_10 = arith.constant 9.99999974E-6 : f32
    %21 = vector.broadcast %cst_10 : f32 to vector<1x128xf32>
    %22 = arith.addf %18, %21 : vector<1x128xf32>
    %23 = math.rsqrt %22 : vector<1x128xf32>
    %24 = vector.broadcast %23 : vector<1x128xf32> to vector<8x128xf32>
    %25 = arith.mulf %20, %24 : vector<8x128xf32>
    %26 = vector.extract_strided_slice %5 {offsets = [0, 0], sizes = [1, 128], strides = [1, 1]} : vector<3x128xf32> to vector<1x128xf32>
    %27 = vector.broadcast %26 : vector<1x128xf32> to vector<8x128xf32>
    %28 = arith.mulf %25, %27 : vector<8x128xf32>
    %29 = vector.extract_strided_slice %5 {offsets = [1, 0], sizes = [1, 128], strides = [1, 1]} : vector<3x128xf32> to vector<1x128xf32>
    %30 = vector.broadcast %29 : vector<1x128xf32> to vector<8x128xf32>
    %31 = arith.addf %28, %30 : vector<8x128xf32>
    %cst_11 = arith.constant 0.000000e+00 : f32
    %32 = vector.broadcast %cst_11 : f32 to vector<8x128xf32>
    %33 = arith.maximumf %31, %32 : vector<8x128xf32>
    %c0_12 = arith.constant 0 : index
    %c0_13 = arith.constant 0 : index
    %c0_14 = arith.constant 0 : index
    %34 = vector.load %arg3[%c0_12, %c0_13, %c0_14] : memref<1x128x128xbf16, #tpu.memory_space<vmem>>, vector<1x128x128xbf16>
    %35 = vector.shape_cast %34 : vector<1x128x128xbf16> to vector<128x128xbf16>
    %36 = arith.truncf %33 : vector<8x128xf32> to vector<8x128xbf16>
    %cst_15 = arith.constant dense<0.000000e+00> : vector<8x128xf32>
    %37 = tpu.matmul %36, %35, %cst_15 {dimension_numbers = #tpu.dot_dimension_numbers<[1], [0], [0], [1], [0, 0, 1, 1], [], []>} : vector<8x128xbf16>, vector<128x128xbf16>, vector<8x128xf32> -> vector<8x128xf32>
    %c1 = arith.constant 1 : index
    %c0_16 = arith.constant 0 : index
    %c0_17 = arith.constant 0 : index
    %38 = vector.load %arg2[%c1, %c0_16, %c0_17] : memref<2x3x128xf32, #tpu.memory_space<vmem>>, vector<1x3x128xf32>
    %39 = vector.shape_cast %38 : vector<1x3x128xf32> to vector<3x128xf32>
    %cst_18 = arith.constant dense<0.000000e+00> : vector<128xf32>
    %40 = vector.multi_reduction <add>, %37, %cst_18 [0] : vector<8x128xf32> to vector<128xf32>
    %41 = vector.shape_cast %40 : vector<128xf32> to vector<1x128xf32>
    %cst_19 = arith.constant 8.000000e+00 : f32
    %42 = vector.broadcast %cst_19 : f32 to vector<1x128xf32>
    %43 = arith.divf %41, %42 : vector<1x128xf32>
    %44 = vector.broadcast %43 : vector<1x128xf32> to vector<8x128xf32>
    %45 = arith.subf %37, %44 : vector<8x128xf32>
    %46 = vector.broadcast %43 : vector<1x128xf32> to vector<8x128xf32>
    %47 = arith.subf %37, %46 : vector<8x128xf32>
    %48 = arith.mulf %45, %47 : vector<8x128xf32>
    %cst_20 = arith.constant dense<0.000000e+00> : vector<128xf32>
    %49 = vector.multi_reduction <add>, %48, %cst_20 [0] : vector<8x128xf32> to vector<128xf32>
    %50 = vector.shape_cast %49 : vector<128xf32> to vector<1x128xf32>
    %cst_21 = arith.constant 8.000000e+00 : f32
    %51 = vector.broadcast %cst_21 : f32 to vector<1x128xf32>
    %52 = arith.divf %50, %51 : vector<1x128xf32>
    %53 = vector.broadcast %43 : vector<1x128xf32> to vector<8x128xf32>
    %54 = arith.subf %37, %53 : vector<8x128xf32>
    %cst_22 = arith.constant 9.99999974E-6 : f32
    %55 = vector.broadcast %cst_22 : f32 to vector<1x128xf32>
    %56 = arith.addf %52, %55 : vector<1x128xf32>
    %57 = math.rsqrt %56 : vector<1x128xf32>
    %58 = vector.broadcast %57 : vector<1x128xf32> to vector<8x128xf32>
    %59 = arith.mulf %54, %58 : vector<8x128xf32>
    %60 = vector.extract_strided_slice %39 {offsets = [0, 0], sizes = [1, 128], strides = [1, 1]} : vector<3x128xf32> to vector<1x128xf32>
    %61 = vector.broadcast %60 : vector<1x128xf32> to vector<8x128xf32>
    %62 = arith.mulf %59, %61 : vector<8x128xf32>
    %63 = vector.extract_strided_slice %39 {offsets = [1, 0], sizes = [1, 128], strides = [1, 1]} : vector<3x128xf32> to vector<1x128xf32>
    %64 = vector.broadcast %63 : vector<1x128xf32> to vector<8x128xf32>
    %65 = arith.addf %62, %64 : vector<8x128xf32>
    %cst_23 = arith.constant 0.000000e+00 : f32
    %66 = vector.broadcast %cst_23 : f32 to vector<8x128xf32>
    %67 = arith.maximumf %65, %66 : vector<8x128xf32>
    %68 = arith.addf %67, %33 : vector<8x128xf32>
    %69 = arith.truncf %68 : vector<8x128xf32> to vector<8x128xbf16>
    %c0_24 = arith.constant 0 : index
    %c0_25 = arith.constant 0 : index
    %70 = vector.load %arg4[%c0_24, %c0_25] : memref<128x256xbf16, #tpu.memory_space<vmem>>, vector<128x256xbf16>
    %cst_26 = arith.constant dense<0.000000e+00> : vector<8x256xf32>
    %71 = tpu.matmul %69, %70, %cst_26 {dimension_numbers = #tpu.dot_dimension_numbers<[1], [0], [0], [1], [0, 0, 1, 1], [], []>} : vector<8x128xbf16>, vector<128x256xbf16>, vector<8x256xf32> -> vector<8x256xf32>
    %c0_27 = arith.constant 0 : index
    %c0_28 = arith.constant 0 : index
    %72 = vector.load %arg5[%c0_27, %c0_28] : memref<1x256xf32, #tpu.memory_space<vmem>>, vector<1x256xf32>
    %73 = vector.broadcast %72 : vector<1x256xf32> to vector<8x256xf32>
    %74 = arith.addf %71, %73 : vector<8x256xf32>
    %75 = vector.extract_strided_slice %74 {offsets = [0, 0], sizes = [8, 128], strides = [1, 1]} : vector<8x256xf32> to vector<8x128xf32>
    %c0_29 = arith.constant 0 : index
    %c0_30 = arith.constant 0 : index
    %76 = vector.load %arg6[%c0_29, %c0_30] : memref<8x128xf32, #tpu.memory_space<vmem>>, vector<8x128xf32>
    tpu.vector_store %arg6[%c0_29, %c0_30], %75 {strides = array<i32>} : memref<8x128xf32, #tpu.memory_space<vmem>>, vector<8x128xf32>,
    %77 = vector.extract_strided_slice %74 {offsets = [0, 128], sizes = [8, 128], strides = [1, 1]} : vector<8x256xf32> to vector<8x128xf32>
    %78 = tpu.iota {dimensions = array<i32: 1>} : vector<1x128xi32>
    %c8_i32 = arith.constant 8 : i32
    %79 = vector.broadcast %c8_i32 : i32 to vector<1x128xi32>
    %80 = arith.cmpi slt, %78, %79 : vector<1x128xi32>
    %81 = math.exp %77 : vector<8x128xf32>
    %cst_31 = arith.constant 0.000000e+00 : f32
    %82 = vector.shape_cast %80 : vector<1x128xi1> to vector<1x128xi1>
    %83 = vector.broadcast %82 : vector<1x128xi1> to vector<8x128xi1>
    %84 = vector.broadcast %cst_31 : f32 to vector<8x128xf32>
    %85 = arith.select %83, %81, %84 : vector<8x128xi1>, vector<8x128xf32>
    %c0_32 = arith.constant 0 : index
    %c0_33 = arith.constant 0 : index
    %86 = vector.load %arg7[%c0_32, %c0_33] : memref<8x128xf32, #tpu.memory_space<vmem>>, vector<8x128xf32>
    tpu.vector_store %arg7[%c0_32, %c0_33], %85 {strides = array<i32>} : memref<8x128xf32, #tpu.memory_space<vmem>>, vector<8x128xf32>,
    return
  }
}

</mosaic_0001>

<llo_original>
// kernel: tpu_custom_call.1
$region0: #{tpu_custom_call.1}
  #allocation0 [shape = 'u32[]', space=smem, size = 0x4, offset = 0x4, fixed_abs, tag = 'smem constant byte address 0x4 - core index']
  #allocation1 [shape = 'u32[72,128]{1,0:T(1,128)}', space=vmem, size = 0x9000, scoped, tag = 'internal scratch']
  %s0 = inlined_call_operand.vmem [shape: f32[8,128], index: 0, kind: input, shape index: {}]
  %s1 = inlined_call_operand.hbm [shape: bf16[128,128], index: 1, kind: input, shape index: {}]
  %s2 = inlined_call_operand.vmem [shape: f32[2,3,128], index: 2, kind: input, shape index: {}]
  %s3 = inlined_call_operand.hbm [shape: bf16[1,128,128], index: 3, kind: input, shape index: {}]
  %s4 = inlined_call_operand.hbm [shape: bf16[128,256], index: 4, kind: input, shape index: {}]
  %s5 = inlined_call_operand.vmem [shape: f32[1,256], index: 5, kind: input, shape index: {}]
  %s6 = inlined_call_operand.hbm [shape: f32[8,128], index: 6, kind: output, shape index: {0}]
  %s7 = inlined_call_operand.hbm [shape: f32[8,128], index: 7, kind: output, shape index: {1}]
  %8 = xla_tuple %s6, %s7
  %s9 = sld [smem:[#allocation0]]
  $region54: #{tpu_custom_call.1} parent=0
    _
  %s11 = ssub.s32 1, %s9
  %s12 = scalar_select 0, %s11, %s9
  $region1: #{tpu_custom_call.1} parent=0
    #allocation2 [shape = 'u8[32768]{0}', space=vmem, size = 0x8000, scoped, tag = 'input window, operand 1, single buffered']
    #allocation3 [shape = 's32[1]{0}', space=sflag, size = 0x4, scoped, tag = 'scoped memory for tpu_custom_call.1']
    #allocation4 [shape = 's32[1]{0}', space=sflag, size = 0x4, scoped, tag = 'scoped memory for tpu_custom_call.1']
    #allocation5 [shape = 'u8[32768]{0}', space=vmem, size = 0x8000, scoped, tag = 'input window, operand 3, single buffered']
    #allocation6 [shape = 's32[1]{0}', space=sflag, size = 0x4, scoped, tag = 'scoped memory for tpu_custom_call.1']
    #allocation7 [shape = 'u8[65536]{0}', space=vmem, size = 0x10000, scoped, tag = 'input window, operand 4, single buffered']
    #allocation8 [shape = 'u8[4096]{0}', space=vmem, size = 0x1000, scoped, tag = 'output window, operand 0, single buffered']
    #allocation9 [shape = 'u8[4096]{0}', space=vmem, size = 0x1000, scoped, tag = 'output window, operand 1, single buffered']
    #allocation10 [shape = 's32[1]{0}', space=sflag, size = 0x4, scoped, tag = 'scoped memory for tpu_custom_call.1']
    %13 = vsyncpa [#allocation3], 0
    %14 = vsyncpa [#allocation6], 0
    %15 = vsyncpa [#allocation4], 0
    %16 = vsyncpa [#allocation10], 0
    // Predicated region
    $region2: #{tpu_custom_call.1} parent=1 // pred_check
      _
    $region3: #{tpu_custom_call.1} parent=1 // pred_check_branch
      %18 = sbr.rel (0) target = $region5
    $region4: #{tpu_custom_call.1} parent=1 // pred_region
      _
    $region5: #{tpu_custom_call.1} parent=1 // pred_fallthru
      _
    // Predicated region
    $region6: #{tpu_custom_call.1} parent=1 // pred_check
      _
    $region7: #{tpu_custom_call.1} parent=1 // pred_check_branch
      %20 = sbr.rel (0) target = $region9
    $region8: #{tpu_custom_call.1} parent=1 // pred_region
      %22 = vsyncadd [#allocation3], 0
      %s23 = sshll.u32 %s1, 4
      %s24 = int_to_ptr.hbm [resolvable:$true] %s23
      %s25 = sshll.u32 [#allocation2], 4
      %s26 = int_to_ptr.vmem [resolvable:$true] %s25
      %31 = dma.hbm_to_vmem [thread:$0]  %s24, 1024, %s26, [#allocation3], 64, 64, 4
    $region9: #{tpu_custom_call.1} parent=1 // pred_fallthru
      _
    // Predicated region
    $region10: #{tpu_custom_call.1} parent=1 // pred_check
      _
    $region11: #{tpu_custom_call.1} parent=1 // pred_check_branch
      %33 = sbr.rel (0) target = $region13
    $region12: #{tpu_custom_call.1} parent=1 // pred_region
      _
    $region13: #{tpu_custom_call.1} parent=1 // pred_fallthru
      _
    // Predicated region
    $region14: #{tpu_custom_call.1} parent=1 // pred_check
      _
    $region15: #{tpu_custom_call.1} parent=1 // pred_check_branch
      %35 = sbr.rel (0) target = $region17
    $region16: #{tpu_custom_call.1} parent=1 // pred_region
      %37 = vsyncadd [#allocation6], 0
      %s38 = sshll.u32 %s3, 4
      %s39 = int_to_ptr.hbm [resolvable:$true] %s38
      %s40 = sshll.u32 [#allocation5], 4
      %s41 = int_to_ptr.vmem [resolvable:$true] %s40
      %46 = dma.hbm_to_vmem [thread:$0]  %s39, 1024, %s41, [#allocation6], 64, 64, 4
    $region17: #{tpu_custom_call.1} parent=1 // pred_fallthru
      _
    // Predicated region
    $region18: #{tpu_custom_call.1} parent=1 // pred_check
      _
    $region19: #{tpu_custom_call.1} parent=1 // pred_check_branch
      %48 = sbr.rel (0) target = $region21
    $region20: #{tpu_custom_call.1} parent=1 // pred_region
      %50 = vsyncadd [#allocation6], 0
      %s51 = sshll.u32 %s4, 4
      %s52 = int_to_ptr.hbm [resolvable:$true] %s51
      %s53 = sshll.u32 [#allocation7], 4
      %s54 = int_to_ptr.vmem [resolvable:$true] %s53
      %59 = dma.hbm_to_vmem [thread:$0]  %s52, 2048, %s54, [#allocation6], 128, 128, 8
    $region21: #{tpu_custom_call.1} parent=1 // pred_fallthru
      _
    // Predicated region
    $region22: #{tpu_custom_call.1} parent=1 // pred_check
      _
    $region23: #{tpu_custom_call.1} parent=1 // pred_check_branch
      %61 = sbr.rel (0) target = $region25
    $region24: #{tpu_custom_call.1} parent=1 // pred_region
      _
    $region25: #{tpu_custom_call.1} parent=1 // pred_fallthru
      _
    // Predicated region
    $region26: #{tpu_custom_call.1} parent=1 // pred_check
      _
    $region27: #{tpu_custom_call.1} parent=1 // pred_check_branch
      %63 = sbr.rel (0) target = $region29
    $region28: #{tpu_custom_call.1} parent=1 // pred_region
      %65 = dma.done [#allocation3], 1024
    $region29: #{tpu_custom_call.1} parent=1 // pred_fallthru
      _
    // Predicated region
    $region30: #{tpu_custom_call.1} parent=1 // pred_check
      _
    $region31: #{tpu_custom_call.1} parent=1 // pred_check_branch
      %67 = sbr.rel (0) target = $region33
    $region32: #{tpu_custom_call.1} parent=1 // pred_region
      %69 = dma.done [#allocation6], 1024
    $region33: #{tpu_custom_call.1} parent=1 // pred_fallthru
      _
    // Predicated region
    $region34: #{tpu_custom_call.1} parent=1 // pred_check
      _
    $region35: #{tpu_custom_call.1} parent=1 // pred_check_branch
      %71 = sbr.rel (0) target = $region37
    $region36: #{tpu_custom_call.1} parent=1 // pred_region
      %73 = dma.done [#allocation6], 2048
    $region37: #{tpu_custom_call.1} parent=1 // pred_fallthru
      _
    %v74 = vld [vmem:[%s0] sm:$0xff]
    %v75 = vld [vmem:[#allocation2] sm:$0xf]
    %v76 = vld [vmem:[#allocation2 + $0x4] sm:$0xf]
    %v77 = vld [vmem:[#allocation2 + $0x8] sm:$0xf]
    %v78 = vld [vmem:[#allocation2 + $0xc] sm:$0xf]
    %v79 = vld [vmem:[#allocation2 + $0x10] sm:$0xf]
    %v80 = vld [vmem:[#allocation2 + $0x14] sm:$0xf]
    %v81 = vld [vmem:[#allocation2 + $0x18] sm:$0xf]
    %v82 = vld [vmem:[#allocation2 + $0x1c] sm:$0xf]
    %v83 = vld [vmem:[#allocation2 + $0x20] sm:$0xf]
    %v84 = vld [vmem:[#allocation2 + $0x24] sm:$0xf]
    %v85 = vld [vmem:[#allocation2 + $0x28] sm:$0xf]
    %v86 = vld [vmem:[#allocation2 + $0x2c] sm:$0xf]
    %v87 = vld [vmem:[#allocation2 + $0x30] sm:$0xf]
    %v88 = vld [vmem:[#allocation2 + $0x34] sm:$0xf]
    %v89 = vld [vmem:[#allocation2 + $0x38] sm:$0xf]
    %v90 = vld [vmem:[#allocation2 + $0x3c] sm:$0xf]
    %v91 = vpack.c.bf16 %v74, %v74
    %v108 = vunpack.c.l.b16 %v75
    %v109 = vunpack.c.l.b16 %v76
    %v110 = vunpack.c.l.b16 %v77
    %v111 = vunpack.c.l.b16 %v78
    %v112 = vunpack.c.l.b16 %v79
    %v113 = vunpack.c.l.b16 %v80
    %v114 = vunpack.c.l.b16 %v81
    %v115 = vunpack.c.l.b16 %v82
    %v116 = vunpack.c.l.b16 %v83
    %v117 = vunpack.c.l.b16 %v84
    %v118 = vunpack.c.l.b16 %v85
    %v119 = vunpack.c.l.b16 %v86
    %v120 = vunpack.c.l.b16 %v87
    %v121 = vunpack.c.l.b16 %v88
    %v122 = vunpack.c.l.b16 %v89
    %v123 = vunpack.c.l.b16 %v90
    %v124 = vpack.c.b16 %v109, %v108
    %v125 = vpack.c.b16 %v111, %v110
    %v126 = vpack.c.b16 %v113, %v112
    %v127 = vpack.c.b16 %v115, %v114
    %v128 = vpack.c.b16 %v117, %v116
    %v129 = vpack.c.b16 %v119, %v118
    %v130 = vpack.c.b16 %v121, %v120
    %v131 = vpack.c.b16 %v123, %v122
    %140 = vmatpush.bf16.msra.mxu0 %v131
    %141 = vmatpush.bf16.msra.mxu0 %v130
    %142 = vmatpush.bf16.msra.mxu0 %v129
    %143 = vmatpush.bf16.msra.mxu0 %v128
    %144 = vmatpush.bf16.msra.mxu0 %v127
    %145 = vmatpush.bf16.msra.mxu0 %v126
    %146 = vmatpush.bf16.msra.mxu0 %v125
    %147 = vmatpush.bf16.msra.mxu0 %v124
    %148 = vmatmul.bf16.gmra.mxu0 %v91
    %v149 = vpop.f32.mrf.mxu0
    %v150 = vadd.f32 0.0, %v149
    %v151 = vpop.f32.mrf.mxu0
    %152 = vdwg.mxu0
    %v153 = vld [vmem:[%s2] sm:$0x7]
    %v154 = vrot.slane %v150, 4
    %v155 = vadd.f32 %v150, %v154
    %v156 = vrot.slane %v155, 2
    %v157 = vadd.f32 %v155, %v156
    %v158 = vrot.slane %v157, 1
    %v159 = vadd.f32 %v157, %v158
    %v160 = vrcp.pop 8.0
    %v161 = vmul.f32 8.0, %v160
    %v162 = vsub.f32 1.0, %v161
    %v163 = vmul.f32 %v160, %v162
    %v164 = vadd.f32 %v160, %v163
    %vm165 = vweird.f32 %v160
    %v166 = vsel %vm165, %v160, %v164
    %v167 = vmul.f32 %v159, %v166
    %v168 = vsub.f32 %v150, %v167
    %v169 = vmul.f32 %v168, %v168
    %v170 = vrot.slane %v169, 4
    %v171 = vadd.f32 %v169, %v170
    %v172 = vrot.slane %v171, 2
    %v173 = vadd.f32 %v171, %v172
    %v174 = vrot.slane %v173, 1
    %v175 = vadd.f32 %v173, %v174
    %v176 = vmul.f32 %v175, %v166
    %v177 = vadd.f32 %v176, 1e-05
    %v178 = vrsqrt.pop %v177
    %v179 = vmul.f32 %v178, %v177
    %v180 = vmul.f32 %v179, %v178
    %v181 = vmul.f32 0.5, %v180
    %v182 = vsub.f32 1.5, %v181
    %v183 = vmul.f32 %v178, %v182
    %vm184 = vweird.f32 %v177
    %vm185 = vweird.f32 %v178
    %vm186 = vmor %vm184, %vm185
    %v187 = vsel %vm186, %v178, %v183
    %v188 = vmul.f32 %v168, %v187
    %v189 = vperm.slane %v153, 0
    %v190 = vmul.f32 %v188, %v189
    %v191 = vperm.slane %v153, 1
    %v192 = vadd.f32 %v190, %v191
    %v193 = vmax.f32 %v192, 0.0
    %v194 = vld [vmem:[#allocation5] sm:$0xf]
    %v195 = vld [vmem:[#allocation5 + $0x4] sm:$0xf]
    %v196 = vld [vmem:[#allocation5 + $0x8] sm:$0xf]
    %v197 = vld [vmem:[#allocation5 + $0xc] sm:$0xf]
    %v198 = vld [vmem:[#allocation5 + $0x10] sm:$0xf]
    %v199 = vld [vmem:[#allocation5 + $0x14] sm:$0xf]
    %v200 = vld [vmem:[#allocation5 + $0x18] sm:$0xf]
    %v201 = vld [vmem:[#allocation5 + $0x1c] sm:$0xf]
    %v202 = vld [vmem:[#allocation5 + $0x20] sm:$0xf]
    %v203 = vld [vmem:[#allocation5 + $0x24] sm:$0xf]
    %v204 = vld [vmem:[#allocation5 + $0x28] sm:$0xf]
    %v205 = vld [vmem:[#allocation5 + $0x2c] sm:$0xf]
    %v206 = vld [vmem:[#allocation5 + $0x30] sm:$0xf]
    %v207 = vld [vmem:[#allocation5 + $0x34] sm:$0xf]
    %v208 = vld [vmem:[#allocation5 + $0x38] sm:$0xf]
    %v209 = vld [vmem:[#allocation5 + $0x3c] sm:$0xf]
    %v210 = vpack.c.bf16 %v193, %v193
    %v227 = vunpack.c.l.b16 %v194
    %v228 = vunpack.c.l.b16 %v195
    %v229 = vunpack.c.l.b16 %v196
    %v230 = vunpack.c.l.b16 %v197
    %v231 = vunpack.c.l.b16 %v198
    %v232 = vunpack.c.l.b16 %v199
    %v233 = vunpack.c.l.b16 %v200
    %v234 = vunpack.c.l.b16 %v201
    %v235 = vunpack.c.l.b16 %v202
    %v236 = vunpack.c.l.b16 %v203
    %v237 = vunpack.c.l.b16 %v204
    %v238 = vunpack.c.l.b16 %v205
    %v239 = vunpack.c.l.b16 %v206
    %v240 = vunpack.c.l.b16 %v207
    %v241 = vunpack.c.l.b16 %v208
    %v242 = vunpack.c.l.b16 %v209
    %v243 = vpack.c.b16 %v228, %v227
    %v244 = vpack.c.b16 %v230, %v229
    %v245 = vpack.c.b16 %v232, %v231
    %v246 = vpack.c.b16 %v234, %v233
    %v247 = vpack.c.b16 %v236, %v235
    %v248 = vpack.c.b16 %v238, %v237
    %v249 = vpack.c.b16 %v240, %v239
    %v250 = vpack.c.b16 %v242, %v241
    %259 = vmatpush.bf16.msra.mxu0 %v250
    %260 = vmatpush.bf16.msra.mxu0 %v249
    %261 = vmatpush.bf16.msra.mxu0 %v248
    %262 = vmatpush.bf16.msra.mxu0 %v247
    %263 = vmatpush.bf16.msra.mxu0 %v246
    %264 = vmatpush.bf16.msra.mxu0 %v245
    %265 = vmatpush.bf16.msra.mxu0 %v244
    %266 = vmatpush.bf16.msra.mxu0 %v243
    %267 = vmatmul.bf16.gmra.mxu0 %v210
    %v268 = vpop.f32.mrf.mxu0
    %v269 = vadd.f32 0.0, %v268
    %v270 = vpop.f32.mrf.mxu0
    %271 = vdwg.mxu0
    %s272 = scalar_lea.vmem %s2, 4
    %v273 = vld [vmem:[%s272] sm:$0x7]
    %v274 = vrot.slane %v269, 4
    %v275 = vadd.f32 %v269, %v274
    %v276 = vrot.slane %v275, 2
    %v277 = vadd.f32 %v275, %v276
    %v278 = vrot.slane %v277, 1
    %v279 = vadd.f32 %v277, %v278
    %v280 = vmul.f32 %v279, %v166
    %v281 = vsub.f32 %v269, %v280
    %v282 = vmul.f32 %v281, %v281
    %v283 = vrot.slane %v282, 4
    %v284 = vadd.f32 %v282, %v283
    %v285 = vrot.slane %v284, 2
    %v286 = vadd.f32 %v284, %v285
    %v287 = vrot.slane %v286, 1
    %v288 = vadd.f32 %v286, %v287
    %v289 = vmul.f32 %v288, %v166
    %v290 = vadd.f32 %v289, 1e-05
    %v291 = vrsqrt.pop %v290
    %v292 = vmul.f32 %v291, %v290
    %v293 = vmul.f32 %v292, %v291
    %v294 = vmul.f32 0.5, %v293
    %v295 = vsub.f32 1.5, %v294
    %v296 = vmul.f32 %v291, %v295
    %vm297 = vweird.f32 %v290
    %vm298 = vweird.f32 %v291
    %vm299 = vmor %vm297, %vm298
    %v300 = vsel %vm299, %v291, %v296
    %v301 = vmul.f32 %v281, %v300
    %v302 = vperm.slane %v273, 0
    %v303 = vmul.f32 %v301, %v302
    %v304 = vperm.slane %v273, 1
    %v305 = vadd.f32 %v303, %v304
    %v306 = vmax.f32 %v305, 0.0
    %v307 = vadd.f32 %v306, %v193
    %v308 = vpack.c.bf16 %v307, %v307
    %v309 = vld [vmem:[#allocation7] sm:$0xff]
    %v310 = vld [vmem:[#allocation7 + $0x8] sm:$0xff]
    %v311 = vld [vmem:[#allocation7 + $0x10] sm:$0xff]
    %v312 = vld [vmem:[#allocation7 + $0x18] sm:$0xff]
    %v313 = vld [vmem:[#allocation7 + $0x20] sm:$0xff]
    %v314 = vld [vmem:[#allocation7 + $0x28] sm:$0xff]
    %v315 = vld [vmem:[#allocation7 + $0x30] sm:$0xff]
    %v316 = vld [vmem:[#allocation7 + $0x38] sm:$0xff]
    %v317 = vld [vmem:[#allocation7 + $0x40] sm:$0xff]
    %v318 = vld [vmem:[#allocation7 + $0x48] sm:$0xff]
    %v319 = vld [vmem:[#allocation7 + $0x50] sm:$0xff]
    %v320 = vld [vmem:[#allocation7 + $0x58] sm:$0xff]
    %v321 = vld [vmem:[#allocation7 + $0x60] sm:$0xff]
    %v322 = vld [vmem:[#allocation7 + $0x68] sm:$0xff]
    %v323 = vld [vmem:[#allocation7 + $0x70] sm:$0xff]
    %v324 = vld [vmem:[#allocation7 + $0x78] sm:$0xff]
    %v325 = vld [vmem:[%s5] sm:$0x3]
    %v327 = vperm.slane %v325, 0
    %v328 = vperm.slane %v325, 1
    %v347 = vunpack.c.l.b16 %v309
    %v348 = vunpack.c.h.b16 %v309
    %v349 = vunpack.c.l.b16 %v310
    %v350 = vunpack.c.h.b16 %v310
    %v351 = vunpack.c.l.b16 %v311
    %v352 = vunpack.c.h.b16 %v311
    %v353 = vunpack.c.l.b16 %v312
    %v354 = vunpack.c.h.b16 %v312
    %v355 = vunpack.c.l.b16 %v313
    %v356 = vunpack.c.h.b16 %v313
    %v357 = vunpack.c.l.b16 %v314
    %v358 = vunpack.c.h.b16 %v314
    %v359 = vunpack.c.l.b16 %v315
    %v360 = vunpack.c.h.b16 %v315
    %v361 = vunpack.c.l.b16 %v316
    %v362 = vunpack.c.h.b16 %v316
    %v363 = vunpack.c.l.b16 %v317
    %v364 = vunpack.c.h.b16 %v317
    %v365 = vunpack.c.l.b16 %v318
    %v366 = vunpack.c.h.b16 %v318
    %v367 = vunpack.c.l.b16 %v319
    %v368 = vunpack.c.h.b16 %v319
    %v369 = vunpack.c.l.b16 %v320
    %v370 = vunpack.c.h.b16 %v320
    %v371 = vunpack.c.l.b16 %v321
    %v372 = vunpack.c.h.b16 %v321
    %v373 = vunpack.c.l.b16 %v322
    %v374 = vunpack.c.h.b16 %v322
    %v375 = vunpack.c.l.b16 %v323
    %v376 = vunpack.c.h.b16 %v323
    %v377 = vunpack.c.l.b16 %v324
    %v378 = vunpack.c.h.b16 %v324
    %v379 = vpack.c.b16 %v349, %v347
    %v380 = vpack.c.b16 %v350, %v348
    %v381 = vpack.c.b16 %v353, %v351
    %v382 = vpack.c.b16 %v354, %v352
    %v383 = vpack.c.b16 %v357, %v355
    %v384 = vpack.c.b16 %v358, %v356
    %v385 = vpack.c.b16 %v361, %v359
    %v386 = vpack.c.b16 %v362, %v360
    %v387 = vpack.c.b16 %v365, %v363
    %v388 = vpack.c.b16 %v366, %v364
    %v389 = vpack.c.b16 %v369, %v367
    %v390 = vpack.c.b16 %v370, %v368
    %v391 = vpack.c.b16 %v373, %v371
    %v392 = vpack.c.b16 %v374, %v372
    %v393 = vpack.c.b16 %v377, %v375
    %v394 = vpack.c.b16 %v378, %v376
    %411 = vmatpush.bf16.msra.mxu0 %v393
    %412 = vmatpush.bf16.msra.mxu0 %v391
    %413 = vmatpush.bf16.msra.mxu0 %v389
    %414 = vmatpush.bf16.msra.mxu0 %v387
    %415 = vmatpush.bf16.msra.mxu0 %v385
    %416 = vmatpush.bf16.msra.mxu0 %v383
    %417 = vmatpush.bf16.msra.mxu0 %v381
    %418 = vmatpush.bf16.msra.mxu0 %v379
    %419 = vmatmul.bf16.gmra.mxu0 %v308
    %v420 = vpop.f32.mrf.mxu0
    %v421 = vadd.f32 %v327, %v420
    %v422 = vpop.f32.mrf.mxu0
    %423 = vdwg.mxu0
    %424 = vmatpush.bf16.msra.mxu0 %v394
    %425 = vmatpush.bf16.msra.mxu0 %v392
    %426 = vmatpush.bf16.msra.mxu0 %v390
    %427 = vmatpush.bf16.msra.mxu0 %v388
    %428 = vmatpush.bf16.msra.mxu0 %v386
    %429 = vmatpush.bf16.msra.mxu0 %v384
    %430 = vmatpush.bf16.msra.mxu0 %v382
    %431 = vmatpush.bf16.msra.mxu0 %v380
    %432 = vmatmul.bf16.gmra.mxu0 %v308
    %v433 = vpop.f32.mrf.mxu0
    %v434 = vadd.f32 %v328, %v433
    %v435 = vpop.f32.mrf.mxu0
    %436 = vdwg.mxu0
    %437 = vst [vmem:[#allocation8] sm:$0xff] %v421
    %v438 = vlaneseq
    %v439 = vand.u32 %v438, 127
    %vm440 = vcmp.lt.s32.totalorder %v439, 8
    %v441 = vmul.f32 %v434, 1.442695
    %v442 = vpow.pop %v441
    %v443 = vsel %vm440, 1, 0
    %vm444 = vcmp.eq.s32.totalorder %v443, 1
    %v445 = vsel %vm444, %v442, 0.0
    %446 = vst [vmem:[#allocation9] sm:$0xff] %v445
    // Predicated region
    $region38: #{tpu_custom_call.1} parent=1 // pred_check
      _
    $region39: #{tpu_custom_call.1} parent=1 // pred_check_branch
      %448 = sbr.rel (0) target = $region41
    $region40: #{tpu_custom_call.1} parent=1 // pred_region
      %450 = vsyncadd [#allocation4], 0
      %s452 = sshll.u32 [#allocation8], 4
      %s453 = int_to_ptr.vmem [resolvable:$true] %s452
      %s454 = sshll.u32 %s6, 4
      %s455 = int_to_ptr.hbm [resolvable:$true] %s454
      %457 = dma.vmem_to_hbm [thread:$0]  %s453, 128, %s455, [#allocation4]
    $region41: #{tpu_custom_call.1} parent=1 // pred_fallthru
      _
    // Predicated region
    $region42: #{tpu_custom_call.1} parent=1 // pred_check
      _
    $region43: #{tpu_custom_call.1} parent=1 // pred_check_branch
      %459 = sbr.rel (0) target = $region45
    $region44: #{tpu_custom_call.1} parent=1 // pred_region
      %461 = vsyncadd [#allocation10], 0
      %s463 = sshll.u32 [#allocation9], 4
      %s464 = int_to_ptr.vmem [resolvable:$true] %s463
      %s465 = sshll.u32 %s7, 4
      %s466 = int_to_ptr.hbm [resolvable:$true] %s465
      %468 = dma.vmem_to_hbm [thread:$0]  %s464, 128, %s466, [#allocation10]
    $region45: #{tpu_custom_call.1} parent=1 // pred_fallthru
      _
    // Predicated region
    $region46: #{tpu_custom_call.1} parent=1 // pred_check
      _
    $region47: #{tpu_custom_call.1} parent=1 // pred_check_branch
      %470 = sbr.rel (0) target = $region49
    $region48: #{tpu_custom_call.1} parent=1 // pred_region
      %472 = dma.done [#allocation4], 128
    $region49: #{tpu_custom_call.1} parent=1 // pred_fallthru
      _
    // Predicated region
    $region50: #{tpu_custom_call.1} parent=1 // pred_check
      _
    $region51: #{tpu_custom_call.1} parent=1 // pred_check_branch
      %474 = sbr.rel (0) target = $region53
    $region52: #{tpu_custom_call.1} parent=1 // pred_region
      %476 = dma.done [#allocation10], 128
    $region53: #{tpu_custom_call.1} parent=1 // pred_fallthru
      _
    %477 = vsyncpa [#allocation3], 1
    %478 = vsyncpa [#allocation6], 1
    %479 = vsyncpa [#allocation4], 1
    %480 = vsyncpa [#allocation10], 1

</llo_original>
